<compile_context>
chip_gen: v5e
topology: v5e:2x2
jax: 0.10.0
libtpu: 0.0.40
codegen_flags: <defaults>
</compile_context>

<pallas_src>
import functools
import numpy as np

import jax
import jax.numpy as jnp
from jax.experimental import pallas as pl
from jax.experimental.pallas import tpu as pltpu

_SUB_MAX = 512                     # max sublane tile (multiple of 8)
_VMEM_LIMIT_BYTES = 48 * 1024 * 1024


def _round_up(x, m):
    return ((x + m - 1) // m) * m


def _cdiv(a, b):
    return (a + b - 1) // b


def _acos_f32(x):
    """float32 arccos on [-1, 1] built from mul/add/sqrt/select only
    (Cephes-style asin polynomial), so it lowers cleanly in Mosaic."""
    a = jnp.abs(x)
    big = a > 0.5
    z_big = 0.5 * (1.0 - a)
    t = jnp.where(big, jnp.sqrt(z_big), a)          # asin argument (<= 0.5)
    z = jnp.where(big, z_big, a * a)
    p = ((((4.2163199048e-2 * z + 2.4181311049e-2) * z + 4.5470025998e-2) * z
          + 7.4953002686e-2) * z + 1.6666752422e-1) * z * t + t
    acos_abs = jnp.where(big, 2.0 * p, jnp.float32(np.pi / 2) - p)   # acos(|x|)
    return jnp.where(x < 0.0, jnp.float32(np.pi) - acos_abs, acos_abs)


def _so3_nll_kernel(x_ref, nll_ref):
    # x_ref block is (27, SUB, 128):
    #   planes 0..8  -> C_est (row-major 3x3)
    #   planes 9..17 -> C_target
    #   planes 18..26 -> Rinv
    def ce(i, j):
        return x_ref[i * 3 + j]

    def ct(i, j):
        return x_ref[9 + i * 3 + j]

    def R(i, j):
        return x_ref[18 + i * 3 + j]

    # A_ij = (C_est @ C_target^T)_ij ; each element computed and consumed once.
    def A(i, j):
        return (ce(i, 0) * ct(j, 0)
                + ce(i, 1) * ct(j, 1)
                + ce(i, 2) * ct(j, 2))

    trace = A(0, 0) + A(1, 1) + A(2, 2)
    cos_angle = jnp.clip(0.5 * trace - 0.5, -1.0, 1.0)
    angle = _acos_f32(cos_angle)

    # 1/sin(angle) via a single EUP rsqrt of (1 - cos^2); small-angle fallback
    # (coef -> 0.5) selected by jnp.where, matching the reference semantics.
    inv_sin = jax.lax.rsqrt(jnp.maximum(1.0 - cos_angle * cos_angle, 1e-30))
    coef = jnp.where(angle < 1e-7, 0.5, 0.5 * angle * inv_sin)

    # residual = coef * vee(A - A^T)
    r0 = coef * (A(2, 1) - A(1, 2))
    r1 = coef * (A(0, 2) - A(2, 0))
    r2 = coef * (A(1, 0) - A(0, 1))

    # 0.5 * r^T Rinv r, accumulated row by row to bound live temporaries.
    w = r0 * (R(0, 0) * r0 + R(0, 1) * r1 + R(0, 2) * r2)
    w = w + r1 * (R(1, 0) * r0 + R(1, 1) * r1 + R(1, 2) * r2)
    w = w + r2 * (R(2, 0) * r0 + R(2, 1) * r1 + R(2, 2) * r2)

    # logdet3(Rinv) via cofactor expansion.
    det = (R(0, 0) * (R(1, 1) * R(2, 2) - R(1, 2) * R(2, 1))
           - R(0, 1) * (R(1, 0) * R(2, 2) - R(1, 2) * R(2, 0))
           + R(0, 2) * (R(1, 0) * R(2, 1) - R(1, 1) * R(2, 0)))

    nll_ref[...] = 0.5 * w - 0.5 * jnp.log(det)


@jax.jit
def so3_nll_loss(C_est, C_target, Rinv):
    """Pallas TPU implementation of SO3NLLLoss.forward. Returns shape (N,)."""
    if C_est.ndim < 3:
        C_est = C_est[None]
        C_target = C_target[None]
    if Rinv.ndim < 3:
        Rinv = Rinv[None]
    n = C_est.shape[0]

    # ---- batch tiling: lanes carry 128 matrices, sublanes carry SUB more ----
    n_128 = _cdiv(n, 128)                       # sublane rows needed
    # Keep >= 2 grid steps once there's meaningful work (v7x megacore), cap the
    # tile at _SUB_MAX, and shrink adaptively for small N to limit padding.
    target_steps = max(2, _cdiv(n_128, _SUB_MAX)) if n_128 > 16 else 1
    sub = max(8, min(_SUB_MAX, _round_up(_cdiv(n_128, target_steps), 8)))
    steps = _cdiv(n_128, sub)
    s = steps * sub
    n_pad = s * 128

    # ---- single fused relayout for all three inputs ----
    # (N,3,3) x3 -> (N,27) -> lax.pad -> (27, S, 128) planar layout.
    packed = jnp.concatenate(
        [C_est.reshape(n, 9), C_target.reshape(n, 9), Rinv.reshape(n, 9)],
        axis=-1).astype(jnp.float32)                               # (N, 27)
    if n_pad > n:
        packed = jax.lax.pad(packed, jnp.float32(0.0),
                             [(0, n_pad - n, 0), (0, 0, 0)])
    planes = packed.reshape(s, 128, 27).transpose(2, 0, 1)          # (27,S,128)

    grid_spec = pltpu.PrefetchScalarGridSpec(
        num_scalar_prefetch=0,
        grid=(steps,),
        in_specs=[pl.BlockSpec((27, sub, 128), lambda i: (0, i, 0))],
        out_specs=pl.BlockSpec((sub, 128), lambda i: (i, 0)),
    )

    out = pl.pallas_call(
        _so3_nll_kernel,
        out_shape=jax.ShapeDtypeStruct((s, 128), jnp.float32),
        grid_spec=grid_spec,
        compiler_params=pltpu.CompilerParams(
            dimension_semantics=("parallel",),
            vmem_limit_bytes=_VMEM_LIMIT_BYTES),
        cost_estimate=pl.CostEstimate(
            flops=130 * n_pad,
            transcendentals=3 * n_pad,
            bytes_accessed=(27 + 1) * 4 * n_pad),
    )(planes)

    return out.reshape(n_pad)[:n]


# ---------------------------- helpers / reference ----------------------------

def so3_exp(phi):
    """Rodrigues: (N, 3) axis-angle -> (N, 3, 3) rotation matrices (plain JAX)."""
    n = phi.shape[0]
    theta = jnp.linalg.norm(phi, axis=1)
    safe = jnp.maximum(theta, 1e-9)
    a = phi / safe[:, None]
    K = jnp.zeros((n, 3, 3), jnp.float32)
    K = K.at[:, 0, 1].set(-a[:, 2]).at[:, 0, 2].set(a[:, 1])
    K = K.at[:, 1, 0].set(a[:, 2]).at[:, 1, 2].set(-a[:, 0])
    K = K.at[:, 2, 0].set(-a[:, 1]).at[:, 2, 1].set(a[:, 0])
    I = jnp.eye(3, dtype=jnp.float32)[None]
    s = jnp.sin(theta)[:, None, None]
    c = jnp.cos(theta)[:, None, None]
    return I + s * K + (1.0 - c) * (K @ K)


def reference_nll(C_est, C_target, Rinv):
    """Plain-JAX reference of the PyTorch module."""
    A = jnp.einsum('nij,nkj->nik', C_est, C_target)
    trace = jnp.trace(A, axis1=1, axis2=2)
    cos_angle = jnp.clip(0.5 * trace - 0.5, -1.0, 1.0)
    angle = jnp.arccos(cos_angle)
    sin_angle = jnp.sin(angle)
    axes = jnp.stack([A[:, 2, 1] - A[:, 1, 2],
                      A[:, 0, 2] - A[:, 2, 0],
                      A[:, 1, 0] - A[:, 0, 1]], axis=1)
    small = angle < 1e-7
    coef = jnp.where(small, 0.5, 0.5 * angle / jnp.where(small, 1.0, sin_angle))
    r = coef[:, None] * axes
    w = 0.5 * jnp.einsum('ni,nij,nj->n', r, Rinv, r)
    logdet = jnp.log(jnp.linalg.det(Rinv))
    return w - 0.5 * logdet


def _make_inputs(key, n):
    k1, k2, k3 = jax.random.split(key, 3)
    phi_est = 0.7 * jax.random.normal(k1, (n, 3), jnp.float32)
    phi_tgt = phi_est + 0.2 * jax.random.normal(k2, (n, 3), jnp.float32)
    C_est = so3_exp(phi_est)
    C_target = so3_exp(phi_tgt)
    B = jax.random.normal(k3, (n, 3, 3), jnp.float32)
    Rinv = (jnp.einsum('nij,nkj->nik', B, B)
            + 3.0 * jnp.eye(3, dtype=jnp.float32)[None])
    return C_est, C_target, Rinv


if __name__ == "__main__":
    key = jax.random.PRNGKey(0)
    kA, kB, kC = jax.random.split(key, 3)

    # Small batch (single tile).
    N = 8
    C_est, C_target, Rinv = _make_inputs(kA, N)
    nll = jax.block_until_ready(so3_nll_loss(C_est, C_target, Rinv))
    ref = reference_nll(C_est, C_target, Rinv)
    assert nll.shape == (N,)
    np.testing.assert_allclose(np.asarray(nll), np.asarray(ref),
                               rtol=1e-3, atol=1e-3)

    # Medium batch to exercise lane/sublane padding.
    N2 = 200
    C_est2, C_target2, Rinv2 = _make_inputs(kB, N2)
    nll2 = jax.block_until_ready(so3_nll_loss(C_est2, C_target2, Rinv2))
    ref2 = reference_nll(C_est2, C_target2, Rinv2)
    assert nll2.shape == (N2,)
    np.testing.assert_allclose(np.asarray(nll2), np.asarray(ref2),
                               rtol=1e-3, atol=1e-3)

    # Larger batch to exercise the multi-step (>=2) grid path.
    N3 = 2200
    C_est3, C_target3, Rinv3 = _make_inputs(kC, N3)
    nll3 = jax.block_until_ready(so3_nll_loss(C_est3, C_target3, Rinv3))
    ref3 = reference_nll(C_est3, C_target3, Rinv3)
    assert nll3.shape == (N3,)
    np.testing.assert_allclose(np.asarray(nll3), np.asarray(ref3),
                               rtol=1e-3, atol=1e-3)

    print("KERNEL_OK")
</pallas_src>

<mosaic_0001>
module attributes {stable_mosaic.version = 11 : i64} {
  func.func @_so3_nll_kernel(%arg0: i32, %arg1: memref<27x8x128xf32, #tpu.memory_space<vmem>>, %arg2: memref<8x128xf32, #tpu.memory_space<vmem>>) attributes {dimension_semantics = [#tpu.dimension_semantics<parallel>], iteration_bounds = array<i64: 1>, scalar_prefetch = 0 : i64, scratch_operands = 0 : i64, tpu.core_type = #tpu.core_type<tc>, window_params = [{transform_indices = @transform_0, window_bounds = array<i64: 27, 8, 128>}, {transform_indices = @transform_1, window_bounds = array<i64: 8, 128>}]} {
    %c0 = arith.constant 0 : index
    %c0_0 = arith.constant 0 : index
    %c0_1 = arith.constant 0 : index
    %0 = vector.load %arg1[%c0, %c0_0, %c0_1] : memref<27x8x128xf32, #tpu.memory_space<vmem>>, vector<1x8x128xf32>
    %1 = vector.shape_cast %0 : vector<1x8x128xf32> to vector<8x128xf32>
    %c9 = arith.constant 9 : index
    %c0_2 = arith.constant 0 : index
    %c0_3 = arith.constant 0 : index
    %2 = vector.load %arg1[%c9, %c0_2, %c0_3] : memref<27x8x128xf32, #tpu.memory_space<vmem>>, vector<1x8x128xf32>
    %3 = vector.shape_cast %2 : vector<1x8x128xf32> to vector<8x128xf32>
    %4 = arith.mulf %1, %3 : vector<8x128xf32>
    %c1 = arith.constant 1 : index
    %c0_4 = arith.constant 0 : index
    %c0_5 = arith.constant 0 : index
    %5 = vector.load %arg1[%c1, %c0_4, %c0_5] : memref<27x8x128xf32, #tpu.memory_space<vmem>>, vector<1x8x128xf32>
    %6 = vector.shape_cast %5 : vector<1x8x128xf32> to vector<8x128xf32>
    %c10 = arith.constant 10 : index
    %c0_6 = arith.constant 0 : index
    %c0_7 = arith.constant 0 : index
    %7 = vector.load %arg1[%c10, %c0_6, %c0_7] : memref<27x8x128xf32, #tpu.memory_space<vmem>>, vector<1x8x128xf32>
    %8 = vector.shape_cast %7 : vector<1x8x128xf32> to vector<8x128xf32>
    %9 = arith.mulf %6, %8 : vector<8x128xf32>
    %10 = arith.addf %4, %9 : vector<8x128xf32>
    %c2 = arith.constant 2 : index
    %c0_8 = arith.constant 0 : index
    %c0_9 = arith.constant 0 : index
    %11 = vector.load %arg1[%c2, %c0_8, %c0_9] : memref<27x8x128xf32, #tpu.memory_space<vmem>>, vector<1x8x128xf32>
    %12 = vector.shape_cast %11 : vector<1x8x128xf32> to vector<8x128xf32>
    %c11 = arith.constant 11 : index
    %c0_10 = arith.constant 0 : index
    %c0_11 = arith.constant 0 : index
    %13 = vector.load %arg1[%c11, %c0_10, %c0_11] : memref<27x8x128xf32, #tpu.memory_space<vmem>>, vector<1x8x128xf32>
    %14 = vector.shape_cast %13 : vector<1x8x128xf32> to vector<8x128xf32>
    %15 = arith.mulf %12, %14 : vector<8x128xf32>
    %16 = arith.addf %10, %15 : vector<8x128xf32>
    %c3 = arith.constant 3 : index
    %c0_12 = arith.constant 0 : index
    %c0_13 = arith.constant 0 : index
    %17 = vector.load %arg1[%c3, %c0_12, %c0_13] : memref<27x8x128xf32, #tpu.memory_space<vmem>>, vector<1x8x128xf32>
    %18 = vector.shape_cast %17 : vector<1x8x128xf32> to vector<8x128xf32>
    %c12 = arith.constant 12 : index
    %c0_14 = arith.constant 0 : index
    %c0_15 = arith.constant 0 : index
    %19 = vector.load %arg1[%c12, %c0_14, %c0_15] : memref<27x8x128xf32, #tpu.memory_space<vmem>>, vector<1x8x128xf32>
    %20 = vector.shape_cast %19 : vector<1x8x128xf32> to vector<8x128xf32>
    %21 = arith.mulf %18, %20 : vector<8x128xf32>
    %c4 = arith.constant 4 : index
    %c0_16 = arith.constant 0 : index
    %c0_17 = arith.constant 0 : index
    %22 = vector.load %arg1[%c4, %c0_16, %c0_17] : memref<27x8x128xf32, #tpu.memory_space<vmem>>, vector<1x8x128xf32>
    %23 = vector.shape_cast %22 : vector<1x8x128xf32> to vector<8x128xf32>
    %c13 = arith.constant 13 : index
    %c0_18 = arith.constant 0 : index
    %c0_19 = arith.constant 0 : index
    %24 = vector.load %arg1[%c13, %c0_18, %c0_19] : memref<27x8x128xf32, #tpu.memory_space<vmem>>, vector<1x8x128xf32>
    %25 = vector.shape_cast %24 : vector<1x8x128xf32> to vector<8x128xf32>
    %26 = arith.mulf %23, %25 : vector<8x128xf32>
    %27 = arith.addf %21, %26 : vector<8x128xf32>
    %c5 = arith.constant 5 : index
    %c0_20 = arith.constant 0 : index
    %c0_21 = arith.constant 0 : index
    %28 = vector.load %arg1[%c5, %c0_20, %c0_21] : memref<27x8x128xf32, #tpu.memory_space<vmem>>, vector<1x8x128xf32>
    %29 = vector.shape_cast %28 : vector<1x8x128xf32> to vector<8x128xf32>
    %c14 = arith.constant 14 : index
    %c0_22 = arith.constant 0 : index
    %c0_23 = arith.constant 0 : index
    %30 = vector.load %arg1[%c14, %c0_22, %c0_23] : memref<27x8x128xf32, #tpu.memory_space<vmem>>, vector<1x8x128xf32>
    %31 = vector.shape_cast %30 : vector<1x8x128xf32> to vector<8x128xf32>
    %32 = arith.mulf %29, %31 : vector<8x128xf32>
    %33 = arith.addf %27, %32 : vector<8x128xf32>
    %34 = arith.addf %16, %33 : vector<8x128xf32>
    %c6 = arith.constant 6 : index
    %c0_24 = arith.constant 0 : index
    %c0_25 = arith.constant 0 : index
    %35 = vector.load %arg1[%c6, %c0_24, %c0_25] : memref<27x8x128xf32, #tpu.memory_space<vmem>>, vector<1x8x128xf32>
    %36 = vector.shape_cast %35 : vector<1x8x128xf32> to vector<8x128xf32>
    %c15 = arith.constant 15 : index
    %c0_26 = arith.constant 0 : index
    %c0_27 = arith.constant 0 : index
    %37 = vector.load %arg1[%c15, %c0_26, %c0_27] : memref<27x8x128xf32, #tpu.memory_space<vmem>>, vector<1x8x128xf32>
    %38 = vector.shape_cast %37 : vector<1x8x128xf32> to vector<8x128xf32>
    %39 = arith.mulf %36, %38 : vector<8x128xf32>
    %c7 = arith.constant 7 : index
    %c0_28 = arith.constant 0 : index
    %c0_29 = arith.constant 0 : index
    %40 = vector.load %arg1[%c7, %c0_28, %c0_29] : memref<27x8x128xf32, #tpu.memory_space<vmem>>, vector<1x8x128xf32>
    %41 = vector.shape_cast %40 : vector<1x8x128xf32> to vector<8x128xf32>
    %c16 = arith.constant 16 : index
    %c0_30 = arith.constant 0 : index
    %c0_31 = arith.constant 0 : index
    %42 = vector.load %arg1[%c16, %c0_30, %c0_31] : memref<27x8x128xf32, #tpu.memory_space<vmem>>, vector<1x8x128xf32>
    %43 = vector.shape_cast %42 : vector<1x8x128xf32> to vector<8x128xf32>
    %44 = arith.mulf %41, %43 : vector<8x128xf32>
    %45 = arith.addf %39, %44 : vector<8x128xf32>
    %c8 = arith.constant 8 : index
    %c0_32 = arith.constant 0 : index
    %c0_33 = arith.constant 0 : index
    %46 = vector.load %arg1[%c8, %c0_32, %c0_33] : memref<27x8x128xf32, #tpu.memory_space<vmem>>, vector<1x8x128xf32>
    %47 = vector.shape_cast %46 : vector<1x8x128xf32> to vector<8x128xf32>
    %c17 = arith.constant 17 : index
    %c0_34 = arith.constant 0 : index
    %c0_35 = arith.constant 0 : index
    %48 = vector.load %arg1[%c17, %c0_34, %c0_35] : memref<27x8x128xf32, #tpu.memory_space<vmem>>, vector<1x8x128xf32>
    %49 = vector.shape_cast %48 : vector<1x8x128xf32> to vector<8x128xf32>
    %50 = arith.mulf %47, %49 : vector<8x128xf32>
    %51 = arith.addf %45, %50 : vector<8x128xf32>
    %52 = arith.addf %34, %51 : vector<8x128xf32>
    %cst = arith.constant 5.000000e-01 : f32
    %53 = vector.broadcast %cst : f32 to vector<8x128xf32>
    %54 = arith.mulf %53, %52 : vector<8x128xf32>
    %cst_36 = arith.constant 5.000000e-01 : f32
    %55 = vector.broadcast %cst_36 : f32 to vector<8x128xf32>
    %56 = arith.subf %54, %55 : vector<8x128xf32>
    %cst_37 = arith.constant -1.000000e+00 : f32
    %cst_38 = arith.constant 1.000000e+00 : f32
    %57 = vector.broadcast %cst_37 : f32 to vector<8x128xf32>
    %58 = arith.maximumf %57, %56 : vector<8x128xf32>
    %59 = vector.broadcast %cst_38 : f32 to vector<8x128xf32>
    %60 = arith.minimumf %59, %58 : vector<8x128xf32>
    %61 = math.absf %60 : vector<8x128xf32>
    %cst_39 = arith.constant 5.000000e-01 : f32
    %62 = vector.broadcast %cst_39 : f32 to vector<8x128xf32>
    %63 = arith.cmpf ogt, %61, %62 : vector<8x128xf32>
    %cst_40 = arith.constant 1.000000e+00 : f32
    %64 = vector.broadcast %cst_40 : f32 to vector<8x128xf32>
    %65 = arith.subf %64, %61 : vector<8x128xf32>
    %cst_41 = arith.constant 5.000000e-01 : f32
    %66 = vector.broadcast %cst_41 : f32 to vector<8x128xf32>
    %67 = arith.mulf %66, %65 : vector<8x128xf32>
    %68 = math.sqrt %67 : vector<8x128xf32>
    %69 = arith.select %63, %68, %61 : vector<8x128xi1>, vector<8x128xf32>
    %70 = arith.mulf %61, %61 : vector<8x128xf32>
    %71 = arith.select %63, %67, %70 : vector<8x128xi1>, vector<8x128xf32>
    %cst_42 = arith.constant 4.216320e-02 : f32
    %72 = vector.broadcast %cst_42 : f32 to vector<8x128xf32>
    %73 = arith.mulf %72, %71 : vector<8x128xf32>
    %cst_43 = arith.constant 0.024181312 : f32
    %74 = vector.broadcast %cst_43 : f32 to vector<8x128xf32>
    %75 = arith.addf %73, %74 : vector<8x128xf32>
    %76 = arith.mulf %75, %71 : vector<8x128xf32>
    %cst_44 = arith.constant 0.0454700254 : f32
    %77 = vector.broadcast %cst_44 : f32 to vector<8x128xf32>
    %78 = arith.addf %76, %77 : vector<8x128xf32>
    %79 = arith.mulf %78, %71 : vector<8x128xf32>
    %cst_45 = arith.constant 0.0749530047 : f32
    %80 = vector.broadcast %cst_45 : f32 to vector<8x128xf32>
    %81 = arith.addf %79, %80 : vector<8x128xf32>
    %82 = arith.mulf %81, %71 : vector<8x128xf32>
    %cst_46 = arith.constant 0.166667521 : f32
    %83 = vector.broadcast %cst_46 : f32 to vector<8x128xf32>
    %84 = arith.addf %82, %83 : vector<8x128xf32>
    %85 = arith.mulf %84, %71 : vector<8x128xf32>
    %86 = arith.mulf %85, %69 : vector<8x128xf32>
    %87 = arith.addf %86, %69 : vector<8x128xf32>
    %cst_47 = arith.constant 2.000000e+00 : f32
    %88 = vector.broadcast %cst_47 : f32 to vector<8x128xf32>
    %89 = arith.mulf %88, %87 : vector<8x128xf32>
    %cst_48 = arith.constant 1.57079637 : f32
    %90 = vector.broadcast %cst_48 : f32 to vector<8x128xf32>
    %91 = arith.subf %90, %87 : vector<8x128xf32>
    %92 = arith.select %63, %89, %91 : vector<8x128xi1>, vector<8x128xf32>
    %cst_49 = arith.constant 0.000000e+00 : f32
    %93 = vector.broadcast %cst_49 : f32 to vector<8x128xf32>
    %94 = arith.cmpf olt, %60, %93 : vector<8x128xf32>
    %cst_50 = arith.constant 3.14159274 : f32
    %95 = vector.broadcast %cst_50 : f32 to vector<8x128xf32>
    %96 = arith.subf %95, %92 : vector<8x128xf32>
    %97 = arith.select %94, %96, %92 : vector<8x128xi1>, vector<8x128xf32>
    %98 = arith.mulf %60, %60 : vector<8x128xf32>
    %cst_51 = arith.constant 1.000000e+00 : f32
    %99 = vector.broadcast %cst_51 : f32 to vector<8x128xf32>
    %100 = arith.subf %99, %98 : vector<8x128xf32>
    %cst_52 = arith.constant 1.000000e-30 : f32
    %101 = vector.broadcast %cst_52 : f32 to vector<8x128xf32>
    %102 = arith.maximumf %100, %101 : vector<8x128xf32>
    %103 = math.rsqrt %102 : vector<8x128xf32>
    %cst_53 = arith.constant 1.000000e-07 : f32
    %104 = vector.broadcast %cst_53 : f32 to vector<8x128xf32>
    %105 = arith.cmpf olt, %97, %104 : vector<8x128xf32>
    %cst_54 = arith.constant 5.000000e-01 : f32
    %106 = vector.broadcast %cst_54 : f32 to vector<8x128xf32>
    %107 = arith.mulf %106, %97 : vector<8x128xf32>
    %108 = arith.mulf %107, %103 : vector<8x128xf32>
    %cst_55 = arith.constant 5.000000e-01 : f32
    %109 = vector.broadcast %cst_55 : f32 to vector<8x128xf32>
    %110 = arith.select %105, %109, %108 : vector<8x128xi1>, vector<8x128xf32>
    %c6_56 = arith.constant 6 : index
    %c0_57 = arith.constant 0 : index
    %c0_58 = arith.constant 0 : index
    %111 = vector.load %arg1[%c6_56, %c0_57, %c0_58] : memref<27x8x128xf32, #tpu.memory_space<vmem>>, vector<1x8x128xf32>
    %112 = vector.shape_cast %111 : vector<1x8x128xf32> to vector<8x128xf32>
    %c12_59 = arith.constant 12 : index
    %c0_60 = arith.constant 0 : index
    %c0_61 = arith.constant 0 : index
    %113 = vector.load %arg1[%c12_59, %c0_60, %c0_61] : memref<27x8x128xf32, #tpu.memory_space<vmem>>, vector<1x8x128xf32>
    %114 = vector.shape_cast %113 : vector<1x8x128xf32> to vector<8x128xf32>
    %115 = arith.mulf %112, %114 : vector<8x128xf32>
    %c7_62 = arith.constant 7 : index
    %c0_63 = arith.constant 0 : index
    %c0_64 = arith.constant 0 : index
    %116 = vector.load %arg1[%c7_62, %c0_63, %c0_64] : memref<27x8x128xf32, #tpu.memory_space<vmem>>, vector<1x8x128xf32>
    %117 = vector.shape_cast %116 : vector<1x8x128xf32> to vector<8x128xf32>
    %c13_65 = arith.constant 13 : index
    %c0_66 = arith.constant 0 : index
    %c0_67 = arith.constant 0 : index
    %118 = vector.load %arg1[%c13_65, %c0_66, %c0_67] : memref<27x8x128xf32, #tpu.memory_space<vmem>>, vector<1x8x128xf32>
    %119 = vector.shape_cast %118 : vector<1x8x128xf32> to vector<8x128xf32>
    %120 = arith.mulf %117, %119 : vector<8x128xf32>
    %121 = arith.addf %115, %120 : vector<8x128xf32>
    %c8_68 = arith.constant 8 : index
    %c0_69 = arith.constant 0 : index
    %c0_70 = arith.constant 0 : index
    %122 = vector.load %arg1[%c8_68, %c0_69, %c0_70] : memref<27x8x128xf32, #tpu.memory_space<vmem>>, vector<1x8x128xf32>
    %123 = vector.shape_cast %122 : vector<1x8x128xf32> to vector<8x128xf32>
    %c14_71 = arith.constant 14 : index
    %c0_72 = arith.constant 0 : index
    %c0_73 = arith.constant 0 : index
    %124 = vector.load %arg1[%c14_71, %c0_72, %c0_73] : memref<27x8x128xf32, #tpu.memory_space<vmem>>, vector<1x8x128xf32>
    %125 = vector.shape_cast %124 : vector<1x8x128xf32> to vector<8x128xf32>
    %126 = arith.mulf %123, %125 : vector<8x128xf32>
    %127 = arith.addf %121, %126 : vector<8x128xf32>
    %c3_74 = arith.constant 3 : index
    %c0_75 = arith.constant 0 : index
    %c0_76 = arith.constant 0 : index
    %128 = vector.load %arg1[%c3_74, %c0_75, %c0_76] : memref<27x8x128xf32, #tpu.memory_space<vmem>>, vector<1x8x128xf32>
    %129 = vector.shape_cast %128 : vector<1x8x128xf32> to vector<8x128xf32>
    %c15_77 = arith.constant 15 : index
    %c0_78 = arith.constant 0 : index
    %c0_79 = arith.constant 0 : index
    %130 = vector.load %arg1[%c15_77, %c0_78, %c0_79] : memref<27x8x128xf32, #tpu.memory_space<vmem>>, vector<1x8x128xf32>
    %131 = vector.shape_cast %130 : vector<1x8x128xf32> to vector<8x128xf32>
    %132 = arith.mulf %129, %131 : vector<8x128xf32>
    %c4_80 = arith.constant 4 : index
    %c0_81 = arith.constant 0 : index
    %c0_82 = arith.constant 0 : index
    %133 = vector.load %arg1[%c4_80, %c0_81, %c0_82] : memref<27x8x128xf32, #tpu.memory_space<vmem>>, vector<1x8x128xf32>
    %134 = vector.shape_cast %133 : vector<1x8x128xf32> to vector<8x128xf32>
    %c16_83 = arith.constant 16 : index
    %c0_84 = arith.constant 0 : index
    %c0_85 = arith.constant 0 : index
    %135 = vector.load %arg1[%c16_83, %c0_84, %c0_85] : memref<27x8x128xf32, #tpu.memory_space<vmem>>, vector<1x8x128xf32>
    %136 = vector.shape_cast %135 : vector<1x8x128xf32> to vector<8x128xf32>
    %137 = arith.mulf %134, %136 : vector<8x128xf32>
    %138 = arith.addf %132, %137 : vector<8x128xf32>
    %c5_86 = arith.constant 5 : index
    %c0_87 = arith.constant 0 : index
    %c0_88 = arith.constant 0 : index
    %139 = vector.load %arg1[%c5_86, %c0_87, %c0_88] : memref<27x8x128xf32, #tpu.memory_space<vmem>>, vector<1x8x128xf32>
    %140 = vector.shape_cast %139 : vector<1x8x128xf32> to vector<8x128xf32>
    %c17_89 = arith.constant 17 : index
    %c0_90 = arith.constant 0 : index
    %c0_91 = arith.constant 0 : index
    %141 = vector.load %arg1[%c17_89, %c0_90, %c0_91] : memref<27x8x128xf32, #tpu.memory_space<vmem>>, vector<1x8x128xf32>
    %142 = vector.shape_cast %141 : vector<1x8x128xf32> to vector<8x128xf32>
    %143 = arith.mulf %140, %142 : vector<8x128xf32>
    %144 = arith.addf %138, %143 : vector<8x128xf32>
    %145 = arith.subf %127, %144 : vector<8x128xf32>
    %146 = arith.mulf %110, %145 : vector<8x128xf32>
    %c0_92 = arith.constant 0 : index
    %c0_93 = arith.constant 0 : index
    %c0_94 = arith.constant 0 : index
    %147 = vector.load %arg1[%c0_92, %c0_93, %c0_94] : memref<27x8x128xf32, #tpu.memory_space<vmem>>, vector<1x8x128xf32>
    %148 = vector.shape_cast %147 : vector<1x8x128xf32> to vector<8x128xf32>
    %c15_95 = arith.constant 15 : index
    %c0_96 = arith.constant 0 : index
    %c0_97 = arith.constant 0 : index
    %149 = vector.load %arg1[%c15_95, %c0_96, %c0_97] : memref<27x8x128xf32, #tpu.memory_space<vmem>>, vector<1x8x128xf32>
    %150 = vector.shape_cast %149 : vector<1x8x128xf32> to vector<8x128xf32>
    %151 = arith.mulf %148, %150 : vector<8x128xf32>
    %c1_98 = arith.constant 1 : index
    %c0_99 = arith.constant 0 : index
    %c0_100 = arith.constant 0 : index
    %152 = vector.load %arg1[%c1_98, %c0_99, %c0_100] : memref<27x8x128xf32, #tpu.memory_space<vmem>>, vector<1x8x128xf32>
    %153 = vector.shape_cast %152 : vector<1x8x128xf32> to vector<8x128xf32>
    %c16_101 = arith.constant 16 : index
    %c0_102 = arith.constant 0 : index
    %c0_103 = arith.constant 0 : index
    %154 = vector.load %arg1[%c16_101, %c0_102, %c0_103] : memref<27x8x128xf32, #tpu.memory_space<vmem>>, vector<1x8x128xf32>
    %155 = vector.shape_cast %154 : vector<1x8x128xf32> to vector<8x128xf32>
    %156 = arith.mulf %153, %155 : vector<8x128xf32>
    %157 = arith.addf %151, %156 : vector<8x128xf32>
    %c2_104 = arith.constant 2 : index
    %c0_105 = arith.constant 0 : index
    %c0_106 = arith.constant 0 : index
    %158 = vector.load %arg1[%c2_104, %c0_105, %c0_106] : memref<27x8x128xf32, #tpu.memory_space<vmem>>, vector<1x8x128xf32>
    %159 = vector.shape_cast %158 : vector<1x8x128xf32> to vector<8x128xf32>
    %c17_107 = arith.constant 17 : index
    %c0_108 = arith.constant 0 : index
    %c0_109 = arith.constant 0 : index
    %160 = vector.load %arg1[%c17_107, %c0_108, %c0_109] : memref<27x8x128xf32, #tpu.memory_space<vmem>>, vector<1x8x128xf32>
    %161 = vector.shape_cast %160 : vector<1x8x128xf32> to vector<8x128xf32>
    %162 = arith.mulf %159, %161 : vector<8x128xf32>
    %163 = arith.addf %157, %162 : vector<8x128xf32>
    %c6_110 = arith.constant 6 : index
    %c0_111 = arith.constant 0 : index
    %c0_112 = arith.constant 0 : index
    %164 = vector.load %arg1[%c6_110, %c0_111, %c0_112] : memref<27x8x128xf32, #tpu.memory_space<vmem>>, vector<1x8x128xf32>
    %165 = vector.shape_cast %164 : vector<1x8x128xf32> to vector<8x128xf32>
    %c9_113 = arith.constant 9 : index
    %c0_114 = arith.constant 0 : index
    %c0_115 = arith.constant 0 : index
    %166 = vector.load %arg1[%c9_113, %c0_114, %c0_115] : memref<27x8x128xf32, #tpu.memory_space<vmem>>, vector<1x8x128xf32>
    %167 = vector.shape_cast %166 : vector<1x8x128xf32> to vector<8x128xf32>
    %168 = arith.mulf %165, %167 : vector<8x128xf32>
    %c7_116 = arith.constant 7 : index
    %c0_117 = arith.constant 0 : index
    %c0_118 = arith.constant 0 : index
    %169 = vector.load %arg1[%c7_116, %c0_117, %c0_118] : memref<27x8x128xf32, #tpu.memory_space<vmem>>, vector<1x8x128xf32>
    %170 = vector.shape_cast %169 : vector<1x8x128xf32> to vector<8x128xf32>
    %c10_119 = arith.constant 10 : index
    %c0_120 = arith.constant 0 : index
    %c0_121 = arith.constant 0 : index
    %171 = vector.load %arg1[%c10_119, %c0_120, %c0_121] : memref<27x8x128xf32, #tpu.memory_space<vmem>>, vector<1x8x128xf32>
    %172 = vector.shape_cast %171 : vector<1x8x128xf32> to vector<8x128xf32>
    %173 = arith.mulf %170, %172 : vector<8x128xf32>
    %174 = arith.addf %168, %173 : vector<8x128xf32>
    %c8_122 = arith.constant 8 : index
    %c0_123 = arith.constant 0 : index
    %c0_124 = arith.constant 0 : index
    %175 = vector.load %arg1[%c8_122, %c0_123, %c0_124] : memref<27x8x128xf32, #tpu.memory_space<vmem>>, vector<1x8x128xf32>
    %176 = vector.shape_cast %175 : vector<1x8x128xf32> to vector<8x128xf32>
    %c11_125 = arith.constant 11 : index
    %c0_126 = arith.constant 0 : index
    %c0_127 = arith.constant 0 : index
    %177 = vector.load %arg1[%c11_125, %c0_126, %c0_127] : memref<27x8x128xf32, #tpu.memory_space<vmem>>, vector<1x8x128xf32>
    %178 = vector.shape_cast %177 : vector<1x8x128xf32> to vector<8x128xf32>
    %179 = arith.mulf %176, %178 : vector<8x128xf32>
    %180 = arith.addf %174, %179 : vector<8x128xf32>
    %181 = arith.subf %163, %180 : vector<8x128xf32>
    %182 = arith.mulf %110, %181 : vector<8x128xf32>
    %c3_128 = arith.constant 3 : index
    %c0_129 = arith.constant 0 : index
    %c0_130 = arith.constant 0 : index
    %183 = vector.load %arg1[%c3_128, %c0_129, %c0_130] : memref<27x8x128xf32, #tpu.memory_space<vmem>>, vector<1x8x128xf32>
    %184 = vector.shape_cast %183 : vector<1x8x128xf32> to vector<8x128xf32>
    %c9_131 = arith.constant 9 : index
    %c0_132 = arith.constant 0 : index
    %c0_133 = arith.constant 0 : index
    %185 = vector.load %arg1[%c9_131, %c0_132, %c0_133] : memref<27x8x128xf32, #tpu.memory_space<vmem>>, vector<1x8x128xf32>
    %186 = vector.shape_cast %185 : vector<1x8x128xf32> to vector<8x128xf32>
    %187 = arith.mulf %184, %186 : vector<8x128xf32>
    %c4_134 = arith.constant 4 : index
    %c0_135 = arith.constant 0 : index
    %c0_136 = arith.constant 0 : index
    %188 = vector.load %arg1[%c4_134, %c0_135, %c0_136] : memref<27x8x128xf32, #tpu.memory_space<vmem>>, vector<1x8x128xf32>
    %189 = vector.shape_cast %188 : vector<1x8x128xf32> to vector<8x128xf32>
    %c10_137 = arith.constant 10 : index
    %c0_138 = arith.constant 0 : index
    %c0_139 = arith.constant 0 : index
    %190 = vector.load %arg1[%c10_137, %c0_138, %c0_139] : memref<27x8x128xf32, #tpu.memory_space<vmem>>, vector<1x8x128xf32>
    %191 = vector.shape_cast %190 : vector<1x8x128xf32> to vector<8x128xf32>
    %192 = arith.mulf %189, %191 : vector<8x128xf32>
    %193 = arith.addf %187, %192 : vector<8x128xf32>
    %c5_140 = arith.constant 5 : index
    %c0_141 = arith.constant 0 : index
    %c0_142 = arith.constant 0 : index
    %194 = vector.load %arg1[%c5_140, %c0_141, %c0_142] : memref<27x8x128xf32, #tpu.memory_space<vmem>>, vector<1x8x128xf32>
    %195 = vector.shape_cast %194 : vector<1x8x128xf32> to vector<8x128xf32>
    %c11_143 = arith.constant 11 : index
    %c0_144 = arith.constant 0 : index
    %c0_145 = arith.constant 0 : index
    %196 = vector.load %arg1[%c11_143, %c0_144, %c0_145] : memref<27x8x128xf32, #tpu.memory_space<vmem>>, vector<1x8x128xf32>
    %197 = vector.shape_cast %196 : vector<1x8x128xf32> to vector<8x128xf32>
    %198 = arith.mulf %195, %197 : vector<8x128xf32>
    %199 = arith.addf %193, %198 : vector<8x128xf32>
    %c0_146 = arith.constant 0 : index
    %c0_147 = arith.constant 0 : index
    %c0_148 = arith.constant 0 : index
    %200 = vector.load %arg1[%c0_146, %c0_147, %c0_148] : memref<27x8x128xf32, #tpu.memory_space<vmem>>, vector<1x8x128xf32>
    %201 = vector.shape_cast %200 : vector<1x8x128xf32> to vector<8x128xf32>
    %c12_149 = arith.constant 12 : index
    %c0_150 = arith.constant 0 : index
    %c0_151 = arith.constant 0 : index
    %202 = vector.load %arg1[%c12_149, %c0_150, %c0_151] : memref<27x8x128xf32, #tpu.memory_space<vmem>>, vector<1x8x128xf32>
    %203 = vector.shape_cast %202 : vector<1x8x128xf32> to vector<8x128xf32>
    %204 = arith.mulf %201, %203 : vector<8x128xf32>
    %c1_152 = arith.constant 1 : index
    %c0_153 = arith.constant 0 : index
    %c0_154 = arith.constant 0 : index
    %205 = vector.load %arg1[%c1_152, %c0_153, %c0_154] : memref<27x8x128xf32, #tpu.memory_space<vmem>>, vector<1x8x128xf32>
    %206 = vector.shape_cast %205 : vector<1x8x128xf32> to vector<8x128xf32>
    %c13_155 = arith.constant 13 : index
    %c0_156 = arith.constant 0 : index
    %c0_157 = arith.constant 0 : index
    %207 = vector.load %arg1[%c13_155, %c0_156, %c0_157] : memref<27x8x128xf32, #tpu.memory_space<vmem>>, vector<1x8x128xf32>
    %208 = vector.shape_cast %207 : vector<1x8x128xf32> to vector<8x128xf32>
    %209 = arith.mulf %206, %208 : vector<8x128xf32>
    %210 = arith.addf %204, %209 : vector<8x128xf32>
    %c2_158 = arith.constant 2 : index
    %c0_159 = arith.constant 0 : index
    %c0_160 = arith.constant 0 : index
    %211 = vector.load %arg1[%c2_158, %c0_159, %c0_160] : memref<27x8x128xf32, #tpu.memory_space<vmem>>, vector<1x8x128xf32>
    %212 = vector.shape_cast %211 : vector<1x8x128xf32> to vector<8x128xf32>
    %c14_161 = arith.constant 14 : index
    %c0_162 = arith.constant 0 : index
    %c0_163 = arith.constant 0 : index
    %213 = vector.load %arg1[%c14_161, %c0_162, %c0_163] : memref<27x8x128xf32, #tpu.memory_space<vmem>>, vector<1x8x128xf32>
    %214 = vector.shape_cast %213 : vector<1x8x128xf32> to vector<8x128xf32>
    %215 = arith.mulf %212, %214 : vector<8x128xf32>
    %216 = arith.addf %210, %215 : vector<8x128xf32>
    %217 = arith.subf %199, %216 : vector<8x128xf32>
    %218 = arith.mulf %110, %217 : vector<8x128xf32>
    %c18 = arith.constant 18 : index
    %c0_164 = arith.constant 0 : index
    %c0_165 = arith.constant 0 : index
    %219 = vector.load %arg1[%c18, %c0_164, %c0_165] : memref<27x8x128xf32, #tpu.memory_space<vmem>>, vector<1x8x128xf32>
    %220 = vector.shape_cast %219 : vector<1x8x128xf32> to vector<8x128xf32>
    %221 = arith.mulf %220, %146 : vector<8x128xf32>
    %c19 = arith.constant 19 : index
    %c0_166 = arith.constant 0 : index
    %c0_167 = arith.constant 0 : index
    %222 = vector.load %arg1[%c19, %c0_166, %c0_167] : memref<27x8x128xf32, #tpu.memory_space<vmem>>, vector<1x8x128xf32>
    %223 = vector.shape_cast %222 : vector<1x8x128xf32> to vector<8x128xf32>
    %224 = arith.mulf %223, %182 : vector<8x128xf32>
    %225 = arith.addf %221, %224 : vector<8x128xf32>
    %c20 = arith.constant 20 : index
    %c0_168 = arith.constant 0 : index
    %c0_169 = arith.constant 0 : index
    %226 = vector.load %arg1[%c20, %c0_168, %c0_169] : memref<27x8x128xf32, #tpu.memory_space<vmem>>, vector<1x8x128xf32>
    %227 = vector.shape_cast %226 : vector<1x8x128xf32> to vector<8x128xf32>
    %228 = arith.mulf %227, %218 : vector<8x128xf32>
    %229 = arith.addf %225, %228 : vector<8x128xf32>
    %230 = arith.mulf %146, %229 : vector<8x128xf32>
    %c21 = arith.constant 21 : index
    %c0_170 = arith.constant 0 : index
    %c0_171 = arith.constant 0 : index
    %231 = vector.load %arg1[%c21, %c0_170, %c0_171] : memref<27x8x128xf32, #tpu.memory_space<vmem>>, vector<1x8x128xf32>
    %232 = vector.shape_cast %231 : vector<1x8x128xf32> to vector<8x128xf32>
    %233 = arith.mulf %232, %146 : vector<8x128xf32>
    %c22 = arith.constant 22 : index
    %c0_172 = arith.constant 0 : index
    %c0_173 = arith.constant 0 : index
    %234 = vector.load %arg1[%c22, %c0_172, %c0_173] : memref<27x8x128xf32, #tpu.memory_space<vmem>>, vector<1x8x128xf32>
    %235 = vector.shape_cast %234 : vector<1x8x128xf32> to vector<8x128xf32>
    %236 = arith.mulf %235, %182 : vector<8x128xf32>
    %237 = arith.addf %233, %236 : vector<8x128xf32>
    %c23 = arith.constant 23 : index
    %c0_174 = arith.constant 0 : index
    %c0_175 = arith.constant 0 : index
    %238 = vector.load %arg1[%c23, %c0_174, %c0_175] : memref<27x8x128xf32, #tpu.memory_space<vmem>>, vector<1x8x128xf32>
    %239 = vector.shape_cast %238 : vector<1x8x128xf32> to vector<8x128xf32>
    %240 = arith.mulf %239, %218 : vector<8x128xf32>
    %241 = arith.addf %237, %240 : vector<8x128xf32>
    %242 = arith.mulf %182, %241 : vector<8x128xf32>
    %243 = arith.addf %230, %242 : vector<8x128xf32>
    %c24 = arith.constant 24 : index
    %c0_176 = arith.constant 0 : index
    %c0_177 = arith.constant 0 : index
    %244 = vector.load %arg1[%c24, %c0_176, %c0_177] : memref<27x8x128xf32, #tpu.memory_space<vmem>>, vector<1x8x128xf32>
    %245 = vector.shape_cast %244 : vector<1x8x128xf32> to vector<8x128xf32>
    %246 = arith.mulf %245, %146 : vector<8x128xf32>
    %c25 = arith.constant 25 : index
    %c0_178 = arith.constant 0 : index
    %c0_179 = arith.constant 0 : index
    %247 = vector.load %arg1[%c25, %c0_178, %c0_179] : memref<27x8x128xf32, #tpu.memory_space<vmem>>, vector<1x8x128xf32>
    %248 = vector.shape_cast %247 : vector<1x8x128xf32> to vector<8x128xf32>
    %249 = arith.mulf %248, %182 : vector<8x128xf32>
    %250 = arith.addf %246, %249 : vector<8x128xf32>
    %c26 = arith.constant 26 : index
    %c0_180 = arith.constant 0 : index
    %c0_181 = arith.constant 0 : index
    %251 = vector.load %arg1[%c26, %c0_180, %c0_181] : memref<27x8x128xf32, #tpu.memory_space<vmem>>, vector<1x8x128xf32>
    %252 = vector.shape_cast %251 : vector<1x8x128xf32> to vector<8x128xf32>
    %253 = arith.mulf %252, %218 : vector<8x128xf32>
    %254 = arith.addf %250, %253 : vector<8x128xf32>
    %255 = arith.mulf %218, %254 : vector<8x128xf32>
    %256 = arith.addf %243, %255 : vector<8x128xf32>
    %c18_182 = arith.constant 18 : index
    %c0_183 = arith.constant 0 : index
    %c0_184 = arith.constant 0 : index
    %257 = vector.load %arg1[%c18_182, %c0_183, %c0_184] : memref<27x8x128xf32, #tpu.memory_space<vmem>>, vector<1x8x128xf32>
    %258 = vector.shape_cast %257 : vector<1x8x128xf32> to vector<8x128xf32>
    %c22_185 = arith.constant 22 : index
    %c0_186 = arith.constant 0 : index
    %c0_187 = arith.constant 0 : index
    %259 = vector.load %arg1[%c22_185, %c0_186, %c0_187] : memref<27x8x128xf32, #tpu.memory_space<vmem>>, vector<1x8x128xf32>
    %260 = vector.shape_cast %259 : vector<1x8x128xf32> to vector<8x128xf32>
    %c26_188 = arith.constant 26 : index
    %c0_189 = arith.constant 0 : index
    %c0_190 = arith.constant 0 : index
    %261 = vector.load %arg1[%c26_188, %c0_189, %c0_190] : memref<27x8x128xf32, #tpu.memory_space<vmem>>, vector<1x8x128xf32>
    %262 = vector.shape_cast %261 : vector<1x8x128xf32> to vector<8x128xf32>
    %263 = arith.mulf %260, %262 : vector<8x128xf32>
    %c23_191 = arith.constant 23 : index
    %c0_192 = arith.constant 0 : index
    %c0_193 = arith.constant 0 : index
    %264 = vector.load %arg1[%c23_191, %c0_192, %c0_193] : memref<27x8x128xf32, #tpu.memory_space<vmem>>, vector<1x8x128xf32>
    %265 = vector.shape_cast %264 : vector<1x8x128xf32> to vector<8x128xf32>
    %c25_194 = arith.constant 25 : index
    %c0_195 = arith.constant 0 : index
    %c0_196 = arith.constant 0 : index
    %266 = vector.load %arg1[%c25_194, %c0_195, %c0_196] : memref<27x8x128xf32, #tpu.memory_space<vmem>>, vector<1x8x128xf32>
    %267 = vector.shape_cast %266 : vector<1x8x128xf32> to vector<8x128xf32>
    %268 = arith.mulf %265, %267 : vector<8x128xf32>
    %269 = arith.subf %263, %268 : vector<8x128xf32>
    %270 = arith.mulf %258, %269 : vector<8x128xf32>
    %c19_197 = arith.constant 19 : index
    %c0_198 = arith.constant 0 : index
    %c0_199 = arith.constant 0 : index
    %271 = vector.load %arg1[%c19_197, %c0_198, %c0_199] : memref<27x8x128xf32, #tpu.memory_space<vmem>>, vector<1x8x128xf32>
    %272 = vector.shape_cast %271 : vector<1x8x128xf32> to vector<8x128xf32>
    %c21_200 = arith.constant 21 : index
    %c0_201 = arith.constant 0 : index
    %c0_202 = arith.constant 0 : index
    %273 = vector.load %arg1[%c21_200, %c0_201, %c0_202] : memref<27x8x128xf32, #tpu.memory_space<vmem>>, vector<1x8x128xf32>
    %274 = vector.shape_cast %273 : vector<1x8x128xf32> to vector<8x128xf32>
    %c26_203 = arith.constant 26 : index
    %c0_204 = arith.constant 0 : index
    %c0_205 = arith.constant 0 : index
    %275 = vector.load %arg1[%c26_203, %c0_204, %c0_205] : memref<27x8x128xf32, #tpu.memory_space<vmem>>, vector<1x8x128xf32>
    %276 = vector.shape_cast %275 : vector<1x8x128xf32> to vector<8x128xf32>
    %277 = arith.mulf %274, %276 : vector<8x128xf32>
    %c23_206 = arith.constant 23 : index
    %c0_207 = arith.constant 0 : index
    %c0_208 = arith.constant 0 : index
    %278 = vector.load %arg1[%c23_206, %c0_207, %c0_208] : memref<27x8x128xf32, #tpu.memory_space<vmem>>, vector<1x8x128xf32>
    %279 = vector.shape_cast %278 : vector<1x8x128xf32> to vector<8x128xf32>
    %c24_209 = arith.constant 24 : index
    %c0_210 = arith.constant 0 : index
    %c0_211 = arith.constant 0 : index
    %280 = vector.load %arg1[%c24_209, %c0_210, %c0_211] : memref<27x8x128xf32, #tpu.memory_space<vmem>>, vector<1x8x128xf32>
    %281 = vector.shape_cast %280 : vector<1x8x128xf32> to vector<8x128xf32>
    %282 = arith.mulf %279, %281 : vector<8x128xf32>
    %283 = arith.subf %277, %282 : vector<8x128xf32>
    %284 = arith.mulf %272, %283 : vector<8x128xf32>
    %285 = arith.subf %270, %284 : vector<8x128xf32>
    %c20_212 = arith.constant 20 : index
    %c0_213 = arith.constant 0 : index
    %c0_214 = arith.constant 0 : index
    %286 = vector.load %arg1[%c20_212, %c0_213, %c0_214] : memref<27x8x128xf32, #tpu.memory_space<vmem>>, vector<1x8x128xf32>
    %287 = vector.shape_cast %286 : vector<1x8x128xf32> to vector<8x128xf32>
    %c21_215 = arith.constant 21 : index
    %c0_216 = arith.constant 0 : index
    %c0_217 = arith.constant 0 : index
    %288 = vector.load %arg1[%c21_215, %c0_216, %c0_217] : memref<27x8x128xf32, #tpu.memory_space<vmem>>, vector<1x8x128xf32>
    %289 = vector.shape_cast %288 : vector<1x8x128xf32> to vector<8x128xf32>
    %c25_218 = arith.constant 25 : index
    %c0_219 = arith.constant 0 : index
    %c0_220 = arith.constant 0 : index
    %290 = vector.load %arg1[%c25_218, %c0_219, %c0_220] : memref<27x8x128xf32, #tpu.memory_space<vmem>>, vector<1x8x128xf32>
    %291 = vector.shape_cast %290 : vector<1x8x128xf32> to vector<8x128xf32>
    %292 = arith.mulf %289, %291 : vector<8x128xf32>
    %c22_221 = arith.constant 22 : index
    %c0_222 = arith.constant 0 : index
    %c0_223 = arith.constant 0 : index
    %293 = vector.load %arg1[%c22_221, %c0_222, %c0_223] : memref<27x8x128xf32, #tpu.memory_space<vmem>>, vector<1x8x128xf32>
    %294 = vector.shape_cast %293 : vector<1x8x128xf32> to vector<8x128xf32>
    %c24_224 = arith.constant 24 : index
    %c0_225 = arith.constant 0 : index
    %c0_226 = arith.constant 0 : index
    %295 = vector.load %arg1[%c24_224, %c0_225, %c0_226] : memref<27x8x128xf32, #tpu.memory_space<vmem>>, vector<1x8x128xf32>
    %296 = vector.shape_cast %295 : vector<1x8x128xf32> to vector<8x128xf32>
    %297 = arith.mulf %294, %296 : vector<8x128xf32>
    %298 = arith.subf %292, %297 : vector<8x128xf32>
    %299 = arith.mulf %287, %298 : vector<8x128xf32>
    %300 = arith.addf %285, %299 : vector<8x128xf32>
    %cst_227 = arith.constant 5.000000e-01 : f32
    %301 = vector.broadcast %cst_227 : f32 to vector<8x128xf32>
    %302 = arith.mulf %301, %256 : vector<8x128xf32>
    %303 = math.log %300 : vector<8x128xf32>
    %cst_228 = arith.constant 5.000000e-01 : f32
    %304 = vector.broadcast %cst_228 : f32 to vector<8x128xf32>
    %305 = arith.mulf %304, %303 : vector<8x128xf32>
    %306 = arith.subf %302, %305 : vector<8x128xf32>
    %c0_229 = arith.constant 0 : index
    %c0_230 = arith.constant 0 : index
    %307 = vector.load %arg2[%c0_229, %c0_230] : memref<8x128xf32, #tpu.memory_space<vmem>>, vector<8x128xf32>
    tpu.vector_store %arg2[%c0_229, %c0_230], %306 {strides = array<i32>} : memref<8x128xf32, #tpu.memory_space<vmem>>, vector<8x128xf32>,
    return
  }
  func.func @transform_0(%arg0: i32) -> (i32, i32, i32) {
    %c0_i32 = arith.constant 0 : i32
    %c0_i32_0 = arith.constant 0 : i32
    %c0_i32_1 = arith.constant 0 : i32
    return %c0_i32, %arg0, %c0_i32_0 : i32, i32, i32
  }
  func.func @transform_1(%arg0: i32) -> (i32, i32) {
    %c0_i32 = arith.constant 0 : i32
    %c0_i32_0 = arith.constant 0 : i32
    return %arg0, %c0_i32 : i32, i32
  }
}

</mosaic_0001>

<llo_original>
// kernel: so3_nll_loss.1
$region0: #{so3_nll_loss.1}
  #allocation0 [shape = 'u32[]', space=smem, size = 0x4, offset = 0x4, fixed_abs, tag = 'smem constant byte address 0x4 - core index']
  #allocation1 [shape = 'u32[72,128]{1,0:T(1,128)}', space=vmem, size = 0x9000, scoped, tag = 'internal scratch']
  %s0 = inlined_call_operand.vmem [shape: f32[27,8,128], index: 0, kind: input, shape index: {}]
  %s1 = inlined_call_operand.vmem [shape: f32[8,128], index: 1, kind: output, shape index: {}]
  %s2 = sld [smem:[#allocation0]]
  $region14: #{so3_nll_loss.1} parent=0
    _
  %s4 = ssub.s32 1, %s2
  %s5 = scalar_select 0, %s4, %s2
  // Predicated region
  $region2: #{so3_nll_loss.1} parent=0 // pred_check
    _
  $region3: #{so3_nll_loss.1} parent=0 // pred_check_branch
    %7 = sbr.rel (0) target = $region5
  $region4: #{so3_nll_loss.1} parent=0 // pred_region
    _
  $region5: #{so3_nll_loss.1} parent=0 // pred_fallthru
    _
  %v8 = vld [vmem:[%s0] sm:$0xff]
  %s9 = scalar_lea.vmem %s0, 72
  %v10 = vld [vmem:[%s9] sm:$0xff]
  %v11 = vmul.f32 %v8, %v10
  %s12 = scalar_lea.vmem %s0, 8
  %v13 = vld [vmem:[%s12] sm:$0xff]
  %s14 = scalar_lea.vmem %s0, 80
  %v15 = vld [vmem:[%s14] sm:$0xff]
  %v16 = vmul.f32 %v13, %v15
  %v17 = vadd.f32 %v11, %v16
  %s18 = scalar_lea.vmem %s0, 16
  %v19 = vld [vmem:[%s18] sm:$0xff]
  %s20 = scalar_lea.vmem %s0, 88
  %v21 = vld [vmem:[%s20] sm:$0xff]
  %v22 = vmul.f32 %v19, %v21
  %v23 = vadd.f32 %v17, %v22
  %s24 = scalar_lea.vmem %s0, 24
  %v25 = vld [vmem:[%s24] sm:$0xff]
  %s26 = scalar_lea.vmem %s0, 96
  %v27 = vld [vmem:[%s26] sm:$0xff]
  %v28 = vmul.f32 %v25, %v27
  %s29 = scalar_lea.vmem %s0, 32
  %v30 = vld [vmem:[%s29] sm:$0xff]
  %s31 = scalar_lea.vmem %s0, 104
  %v32 = vld [vmem:[%s31] sm:$0xff]
  %v33 = vmul.f32 %v30, %v32
  %v34 = vadd.f32 %v28, %v33
  %s35 = scalar_lea.vmem %s0, 40
  %v36 = vld [vmem:[%s35] sm:$0xff]
  %s37 = scalar_lea.vmem %s0, 112
  %v38 = vld [vmem:[%s37] sm:$0xff]
  %v39 = vmul.f32 %v36, %v38
  %v40 = vadd.f32 %v34, %v39
  %v41 = vadd.f32 %v23, %v40
  %s42 = scalar_lea.vmem %s0, 48
  %v43 = vld [vmem:[%s42] sm:$0xff]
  %s44 = scalar_lea.vmem %s0, 120
  %v45 = vld [vmem:[%s44] sm:$0xff]
  %v46 = vmul.f32 %v43, %v45
  %s47 = scalar_lea.vmem %s0, 56
  %v48 = vld [vmem:[%s47] sm:$0xff]
  %s49 = scalar_lea.vmem %s0, 128
  %v50 = vld [vmem:[%s49] sm:$0xff]
  %v51 = vmul.f32 %v48, %v50
  %v52 = vadd.f32 %v46, %v51
  %s53 = scalar_lea.vmem %s0, 64
  %v54 = vld [vmem:[%s53] sm:$0xff]
  %s55 = scalar_lea.vmem %s0, 136
  %v56 = vld [vmem:[%s55] sm:$0xff]
  %v57 = vmul.f32 %v54, %v56
  %v58 = vadd.f32 %v52, %v57
  %v59 = vadd.f32 %v41, %v58
  %v60 = vmul.f32 %v59, 0.5
  %v61 = vsub.f32 %v60, 0.5
  %v62 = vmax.f32 %v61, -1.0
  %v63 = vmin.f32 %v62, 1.0
  %v64 = vand.u32 2147483647, %v63
  %vm65 = vcmp.gt.f32.partialorder %v64, 0.5
  %v66 = vsub.f32 1.0, %v64
  %v67 = vmul.f32 %v66, 0.5
  %v68 = vrsqrt.pop %v67
  %v69 = vmul.f32 %v68, %v67
  %v70 = vmul.f32 %v69, %v68
  %v71 = vmul.f32 0.5, %v70
  %v72 = vsub.f32 1.5, %v71
  %v73 = vmul.f32 %v68, %v72
  %v74 = vmul.f32 %v67, %v73
  %vm75 = vcmp.eq.f32.partialorder %v67, inf
  %v76 = vsel %vm75, %v67, %v74
  %vm77 = vcmp.eq.f32.partialorder %v67, 0.0
  %v78 = vand.u32 %v67, 2147483648
  %v79 = vsel %vm77, %v78, %v76
  %v80 = vsel %vm65, %v79, %v64
  %v81 = vmul.f32 %v64, %v64
  %v82 = vsel %vm65, %v67, %v81
  %v83 = vmul.f32 %v82, 0.0421632
  %v84 = vadd.f32 %v83, 0.024181312
  %v85 = vmul.f32 %v84, %v82
  %v86 = vadd.f32 %v85, 0.045470025
  %v87 = vmul.f32 %v86, %v82
  %v88 = vadd.f32 %v87, 0.074953005
  %v89 = vmul.f32 %v88, %v82
  %v90 = vadd.f32 %v89, 0.16666752
  %v91 = vmul.f32 %v90, %v82
  %v92 = vmul.f32 %v91, %v80
  %v93 = vadd.f32 %v92, %v80
  %v94 = vmul.f32 %v93, 2.0
  %v95 = vsub.f32 1.5707964, %v93
  %v96 = vsel %vm65, %v94, %v95
  %vm97 = vcmp.lt.f32.partialorder %v63, 0.0
  %v98 = vsub.f32 3.1415927, %v96
  %v99 = vsel %vm97, %v98, %v96
  %v100 = vmul.f32 %v63, %v63
  %v101 = vsub.f32 1.0, %v100
  %v102 = vmax.f32 %v101, 1e-30
  %v103 = vrsqrt.pop %v102
  %v104 = vmul.f32 %v103, %v102
  %v105 = vmul.f32 %v104, %v103
  %v106 = vmul.f32 0.5, %v105
  %v107 = vsub.f32 1.5, %v106
  %v108 = vmul.f32 %v103, %v107
  %vm109 = vweird.f32 %v102
  %vm110 = vweird.f32 %v103
  %vm111 = vmor %vm109, %vm110
  %v112 = vsel %vm111, %v103, %v108
  %vm113 = vcmp.lt.f32.partialorder %v99, 1e-07
  %v114 = vmul.f32 %v99, 0.5
  %v115 = vmul.f32 %v114, %v112
  %v116 = vsel %vm113, 0.5, %v115
  %v117 = vmul.f32 %v43, %v27
  %v118 = vmul.f32 %v48, %v32
  %v119 = vadd.f32 %v117, %v118
  %v120 = vmul.f32 %v54, %v38
  %v121 = vadd.f32 %v119, %v120
  %v122 = vmul.f32 %v25, %v45
  %v123 = vmul.f32 %v30, %v50
  %v124 = vadd.f32 %v122, %v123
  %v125 = vmul.f32 %v36, %v56
  %v126 = vadd.f32 %v124, %v125
  %v127 = vsub.f32 %v121, %v126
  %v128 = vmul.f32 %v116, %v127
  %v129 = vmul.f32 %v8, %v45
  %v130 = vmul.f32 %v13, %v50
  %v131 = vadd.f32 %v129, %v130
  %v132 = vmul.f32 %v19, %v56
  %v133 = vadd.f32 %v131, %v132
  %v134 = vmul.f32 %v43, %v10
  %v135 = vmul.f32 %v48, %v15
  %v136 = vadd.f32 %v134, %v135
  %v137 = vmul.f32 %v54, %v21
  %v138 = vadd.f32 %v136, %v137
  %v139 = vsub.f32 %v133, %v138
  %v140 = vmul.f32 %v116, %v139
  %v141 = vmul.f32 %v25, %v10
  %v142 = vmul.f32 %v30, %v15
  %v143 = vadd.f32 %v141, %v142
  %v144 = vmul.f32 %v36, %v21
  %v145 = vadd.f32 %v143, %v144
  %v146 = vmul.f32 %v8, %v27
  %v147 = vmul.f32 %v13, %v32
  %v148 = vadd.f32 %v146, %v147
  %v149 = vmul.f32 %v19, %v38
  %v150 = vadd.f32 %v148, %v149
  %v151 = vsub.f32 %v145, %v150
  %v152 = vmul.f32 %v116, %v151
  %s153 = scalar_lea.vmem %s0, 144
  %v154 = vld [vmem:[%s153] sm:$0xff]
  %v155 = vmul.f32 %v154, %v128
  %s156 = scalar_lea.vmem %s0, 152
  %v157 = vld [vmem:[%s156] sm:$0xff]
  %v158 = vmul.f32 %v157, %v140
  %v159 = vadd.f32 %v155, %v158
  %s160 = scalar_lea.vmem %s0, 160
  %v161 = vld [vmem:[%s160] sm:$0xff]
  %v162 = vmul.f32 %v161, %v152
  %v163 = vadd.f32 %v159, %v162
  %v164 = vmul.f32 %v128, %v163
  %s165 = scalar_lea.vmem %s0, 168
  %v166 = vld [vmem:[%s165] sm:$0xff]
  %v167 = vmul.f32 %v166, %v128
  %s168 = scalar_lea.vmem %s0, 176
  %v169 = vld [vmem:[%s168] sm:$0xff]
  %v170 = vmul.f32 %v169, %v140
  %v171 = vadd.f32 %v167, %v170
  %s172 = scalar_lea.vmem %s0, 184
  %v173 = vld [vmem:[%s172] sm:$0xff]
  %v174 = vmul.f32 %v173, %v152
  %v175 = vadd.f32 %v171, %v174
  %v176 = vmul.f32 %v140, %v175
  %v177 = vadd.f32 %v164, %v176
  %s178 = scalar_lea.vmem %s0, 192
  %v179 = vld [vmem:[%s178] sm:$0xff]
  %v180 = vmul.f32 %v179, %v128
  %s181 = scalar_lea.vmem %s0, 200
  %v182 = vld [vmem:[%s181] sm:$0xff]
  %v183 = vmul.f32 %v182, %v140
  %v184 = vadd.f32 %v180, %v183
  %s185 = scalar_lea.vmem %s0, 208
  %v186 = vld [vmem:[%s185] sm:$0xff]
  %v187 = vmul.f32 %v186, %v152
  %v188 = vadd.f32 %v184, %v187
  %v189 = vmul.f32 %v152, %v188
  %v190 = vadd.f32 %v177, %v189
  %v191 = vmul.f32 %v169, %v186
  %v192 = vmul.f32 %v173, %v182
  %v193 = vsub.f32 %v191, %v192
  %v194 = vmul.f32 %v154, %v193
  %v195 = vmul.f32 %v166, %v186
  %v196 = vmul.f32 %v173, %v179
  %v197 = vsub.f32 %v195, %v196
  %v198 = vmul.f32 %v157, %v197
  %v199 = vsub.f32 %v194, %v198
  %v200 = vmul.f32 %v166, %v182
  %v201 = vmul.f32 %v169, %v179
  %v202 = vsub.f32 %v200, %v201
  %v203 = vmul.f32 %v161, %v202
  %v204 = vadd.f32 %v199, %v203
  %v205 = vmul.f32 %v190, 0.5
  %v206 = vlog2.pop %v204
  %v207 = vmul.f32 %v206, 0.6931472
  %v208 = vmul.f32 %v207, 0.5
  %v209 = vsub.f32 %v205, %v208
  %210 = vst [vmem:[%s1] sm:$0xff] %v209
  // Predicated region
  $region6: #{so3_nll_loss.1} parent=0 // pred_check
    _
  $region7: #{so3_nll_loss.1} parent=0 // pred_check_branch
    %212 = sbr.rel (0) target = $region9
  $region8: #{so3_nll_loss.1} parent=0 // pred_region
    _
  $region9: #{so3_nll_loss.1} parent=0 // pred_fallthru
    _
  // Predicated region
  $region10: #{so3_nll_loss.1} parent=0 // pred_check
    _
  $region11: #{so3_nll_loss.1} parent=0 // pred_check_branch
    %214 = sbr.rel (0) target = $region13
  $region12: #{so3_nll_loss.1} parent=0 // pred_region
    _
  $region13: #{so3_nll_loss.1} parent=0 // pred_fallthru
    _

</llo_original>
